<compile_context>
chip_gen: v7x
topology: tpu7x:2x2x1
jax: 0.10.0
libtpu: 0.0.40
codegen_flags: <defaults>
</compile_context>

<pallas_src>
from functools import partial

import numpy as np
import jax
import jax.numpy as jnp
from jax.experimental import pallas as pl
from jax.experimental.pallas import tpu as pltpu

_VMEM_TILE_BUDGET = 20 * 1024 * 1024  # rough cap for per-tile f32 intermediates


def _round_up(x, m):
    return (x + m - 1) // m * m


def _cross_attention_kernel(xs_ref, xt_ref, wq_ref, bq_ref, wkv_ref, bkv_ref,
                            ssum_ref, mperm_ref, dsum_ref, pexp_ref,
                            wo_ref, bo_ref, o_ref, *, num_heads, feature_dim,
                            n_max_steps):
    H, F = num_heads, feature_dim
    HF = H * F

    xs = xs_ref[...].astype(jnp.bfloat16)                    # (TM, F)
    xt = xt_ref[...].astype(jnp.bfloat16)                    # (TM, F)

    # ---- projections: replication + softmax scale folded into the weights --
    # q_rep[:, g*F + h*D + d] = scale * Q[:, h*D + d]
    q_rep = jnp.dot(xs, wq_ref[...],
                    preferred_element_type=jnp.float32) + bq_ref[...]
    # kv_rep[:, g*F + h*D + d]        = K[:, g*D + d]
    # kv_rep[:, HF + g*F + h*D + d]   = V[:, g*D + d]
    kv_rep = jnp.dot(xt, wkv_ref[...],
                     preferred_element_type=jnp.float32) + bkv_ref[...]
    k_rep = kv_rep[:, :HF]                                    # vreg-aligned slice
    v_rep = kv_rep[:, HF:]

    # ---- energy (TM, H*H), column c = g*H + h ------------------------------
    energy = jnp.dot(q_rep * k_rep, ssum_ref[...],
                     preferred_element_type=jnp.float32)

    # ---- full-width numerically-stable softmax over g (columns with the same
    #      c % H).  Per-head max via exact cyclic group-shift permutations.
    m = energy
    for s in range(n_max_steps):
        m = jnp.maximum(m, jnp.dot(m, mperm_ref[s],
                                   preferred_element_type=jnp.float32))
    p = jnp.exp(energy - m)
    denom = jnp.dot(p, dsum_ref[...], preferred_element_type=jnp.float32)
    attn = p * pl.reciprocal(denom, approx=True)              # EUP slot

    # ---- attention-weighted V + fc_out as ONE wide matmul ------------------
    # attn_rep[:, g*F + h*D + d] = attn[:, g*H + h]
    attn_rep = jnp.dot(attn, pexp_ref[...],
                       preferred_element_type=jnp.float32)
    ctx = (attn_rep * v_rep).astype(jnp.bfloat16)             # (TM, H*F)
    # wo_ref folds: sum over g, torch's permute(0,2,1).view order.
    out = jnp.dot(ctx, wo_ref[...],
                  preferred_element_type=jnp.float32) + bo_ref[...]
    o_ref[...] = out.astype(o_ref.dtype)                      # (TM, F) store


def prepare_cross_attention_params(params, feature_dim, num_heads):
    """One-time (offline) weight prep.  torch layout in: W (out,in), b (out,)."""
    wq, bq, wk, bk, wv, bv, wo, bo = (np.asarray(p, dtype=np.float32) for p in params)
    F, H = feature_dim, num_heads
    D = F // H
    assert D * H == F, "feature_dim must be divisible by num_heads"
    HF, HH = H * F, H * H
    scale = float(D) ** -0.5

    # Constant 0/1 matrices for head-wise segmented expand / sum:
    #   a_exp: x[:, g*D+d]            -> column g*F + h*D + d   (F,   HF)
    #   s_blk: sum_d over block (g,h) -> column g*H + h         (HF,  HH)
    #   p_exp: attn[:, g*H+h]         -> column g*F + h*D + d   (HH,  HF)
    a_exp = np.zeros((F, HF), dtype=np.float32)
    s_blk = np.zeros((HF, HH), dtype=np.float32)
    p_exp = np.zeros((HH, HF), dtype=np.float32)
    for g in range(H):
        for h in range(H):
            for d in range(D):
                a_exp[g * D + d, g * F + h * D + d] = 1.0
                s_blk[g * F + h * D + d, g * H + h] = 1.0
                p_exp[g * H + h, g * F + h * D + d] = 1.0

    # Projections with the replication (and softmax scale) folded in offline.
    wq_rep = scale * np.tile(wq.T, (1, H))                     # (F, HF)
    bq_rep = scale * np.tile(bq, H).reshape(1, HF)
    wkv_rep = np.concatenate([wk.T @ a_exp, wv.T @ a_exp], axis=1)   # (F, 2HF)
    bkv_rep = np.concatenate([bk @ a_exp, bv @ a_exp]).reshape(1, 2 * HF)

    # Cyclic group-shift permutations for the doubling per-head max.
    shifts = []
    window = 1
    while window < H:
        s = min(window, H - window)
        shifts.append(s)
        window += s
    if not shifts:                       # H == 1: identity (max is a no-op)
        shifts = [0]
    mperm = np.zeros((len(shifts), HH, HH), dtype=np.float32)
    for i, s in enumerate(shifts):
        for c in range(HH):
            mperm[i, (c + s * H) % HH, c] = 1.0

    # Denominator broadcast: sum over g for each query head h = c % H.
    dsum = np.zeros((HH, HH), dtype=np.float32)
    for c1 in range(HH):
        for c2 in range(HH):
            if c1 % H == c2 % H:
                dsum[c1, c2] = 1.0

    # fc_out: fold torch's permute(0,2,1).view flatten order (column d*H + h)
    # and the sum-over-g back to (h*D + d) columns into one (HF, F) weight.
    perm = np.array([d * H + h for h in range(H) for d in range(D)])
    w_fc = wo.T[perm, :]                                       # (F, F)
    wo_big = np.tile(w_fc, (H, 1))                             # (HF, F)
    bo_r = bo.reshape(1, F)

    return dict(
        feature_dim=F, num_heads=H, n_max_steps=len(shifts),
        wq_rep=jnp.asarray(wq_rep, jnp.bfloat16),
        bq_rep=jnp.asarray(bq_rep, jnp.float32),
        wkv_rep=jnp.asarray(wkv_rep, jnp.bfloat16),
        bkv_rep=jnp.asarray(bkv_rep, jnp.float32),
        s_blk=jnp.asarray(s_blk, jnp.float32),
        mperm=jnp.asarray(mperm, jnp.float32),
        dsum=jnp.asarray(dsum, jnp.float32),
        p_exp=jnp.asarray(p_exp, jnp.float32),
        wo_big=jnp.asarray(wo_big, jnp.bfloat16),
        bo=jnp.asarray(bo_r, jnp.float32),
    )


def cross_attention_pallas(x_source, x_target, prepared, row_tile=1024):
    B, F = x_source.shape
    H = prepared["num_heads"]
    assert F == prepared["feature_dim"]
    HF, HH = H * F, H * H

    # --- tile selection ------------------------------------------------------
    row_tile = max(8, _round_up(int(row_tile), 8))      # (8,128) sublane rule
    b8 = _round_up(B, 8)
    tile_rows = min(row_tile, b8)
    # v7x has two TensorCores: prefer >=2 'parallel' grid steps when B permits.
    if tile_rows >= b8 and b8 >= 16:
        tile_rows = _round_up((b8 + 1) // 2, 8)
    # Crude VMEM budget for live f32 intermediates (safe for v7x's 64 MiB too).
    bytes_per_row = 4 * (3 * F + 6 * HF + 5 * HH)
    max_rows = max(8, (_VMEM_TILE_BUDGET // bytes_per_row) // 8 * 8)
    tile_rows = min(tile_rows, max_rows)

    r_pad = _round_up(B, tile_rows)
    if r_pad != B:
        pad = ((0, r_pad - B), (0, 0))
        xs = jnp.pad(x_source, pad)
        xt = jnp.pad(x_target, pad)
    else:
        xs, xt = x_source, x_target

    weights = [prepared[k] for k in ("wq_rep", "bq_rep", "wkv_rep", "bkv_rep",
                                     "s_blk", "mperm", "dsum", "p_exp",
                                     "wo_big", "bo")]
    row_spec = pl.BlockSpec((tile_rows, F), lambda i: (i, 0))
    # Weights / constants stay VMEM-resident across grid steps.
    in_specs = [row_spec, row_spec] + [
        pl.BlockSpec(w.shape, (lambda i, _r=w.ndim: (0,) * _r)) for w in weights
    ]

    kernel = partial(_cross_attention_kernel, num_heads=H, feature_dim=F,
                     n_max_steps=prepared["n_max_steps"])

    out = pl.pallas_call(
        kernel,
        out_shape=jax.ShapeDtypeStruct((r_pad, F), x_source.dtype),
        grid=(r_pad // tile_rows,),
        in_specs=in_specs,
        out_specs=pl.BlockSpec((tile_rows, F), lambda i: (i, 0)),
        compiler_params=pltpu.CompilerParams(
            dimension_semantics=("parallel",)),   # rows shard across TCs on v7x
    )(xs, xt, *weights)

    return out if r_pad == B else out[:B]


def cross_attention_reference(x_source, x_target, params, num_heads):
    """Pure-JAX transcription of the PyTorch forward (for verification)."""
    wq, bq, wk, bk, wv, bv, wo, bo = params
    B, F = x_source.shape
    D = F // num_heads
    Q = x_source @ wq.T + bq
    K = x_target @ wk.T + bk
    V = x_target @ wv.T + bv
    Q = Q.reshape(B, num_heads, D)
    K = K.reshape(B, num_heads, D)
    V = V.reshape(B, num_heads, D)
    energy = jnp.einsum('bhd,bgd->bhg', Q, K) * (D ** -0.5)
    attn = jax.nn.softmax(energy, axis=-1)
    out = jnp.einsum('bhg,bgd->bhd', attn, V)
    out = jnp.transpose(out, (0, 2, 1)).reshape(B, F)
    return out @ wo.T + bo


if __name__ == "__main__":
    B = 2
    feature_dim = 32
    num_heads = 4

    key = jax.random.PRNGKey(0)
    keys = jax.random.split(key, 12)

    x_source = jax.random.normal(keys[0], (B, feature_dim), jnp.float32)
    x_target = jax.random.normal(keys[1], (B, feature_dim), jnp.float32)

    def w(k):
        return 0.1 * jax.random.normal(k, (feature_dim, feature_dim), jnp.float32)

    def b(k):
        return 0.1 * jax.random.normal(k, (feature_dim,), jnp.float32)

    params = (w(keys[2]), b(keys[3]),   # query
              w(keys[4]), b(keys[5]),   # key
              w(keys[6]), b(keys[7]),   # value
              w(keys[8]), b(keys[9]))   # fc_out

    # One-time weight preparation (hoisted out of the per-call path).
    prepared = prepare_cross_attention_params(params, feature_dim, num_heads)

    # Primary check: the module's natural (tiny) shape.
    out = cross_attention_pallas(x_source, x_target, prepared)
    out = jax.block_until_ready(out)
    ref = cross_attention_reference(x_source, x_target, params, num_heads)
    assert out.shape == (B, feature_dim)
    # bf16 MXU operands + approx reciprocal => not bit-exact vs. f32 reference.
    err = float(jnp.max(jnp.abs(out - ref)))
    assert err < 3e-2, f"max abs err {err}"

    # Secondary check: many stacked instances exercise the multi-step row grid.
    xs_big = jax.random.normal(keys[10], (40, feature_dim), jnp.float32)
    xt_big = jax.random.normal(keys[11], (40, feature_dim), jnp.float32)
    out_big = jax.block_until_ready(
        cross_attention_pallas(xs_big, xt_big, prepared, row_tile=16))
    ref_big = cross_attention_reference(xs_big, xt_big, params, num_heads)
    assert out_big.shape == (40, feature_dim)
    err_big = float(jnp.max(jnp.abs(out_big - ref_big)))
    assert err_big < 3e-2, f"max abs err (grid) {err_big}"

    print("KERNEL_OK")
</pallas_src>

<mosaic_0001>
module attributes {stable_mosaic.version = 11 : i64} {
  func.func @_cross_attention_kernel(%arg0: i32, %arg1: memref<8x32xf32, #tpu.memory_space<vmem>>, %arg2: memref<8x32xf32, #tpu.memory_space<vmem>>, %arg3: memref<32x128xbf16, #tpu.memory_space<vmem>>, %arg4: memref<1x128xf32, #tpu.memory_space<vmem>>, %arg5: memref<32x256xbf16, #tpu.memory_space<vmem>>, %arg6: memref<1x256xf32, #tpu.memory_space<vmem>>, %arg7: memref<128x16xf32, #tpu.memory_space<vmem>>, %arg8: memref<2x16x16xf32, #tpu.memory_space<vmem>>, %arg9: memref<16x16xf32, #tpu.memory_space<vmem>>, %arg10: memref<16x128xf32, #tpu.memory_space<vmem>>, %arg11: memref<128x32xbf16, #tpu.memory_space<vmem>>, %arg12: memref<1x32xf32, #tpu.memory_space<vmem>>, %arg13: memref<8x32xf32, #tpu.memory_space<vmem>>) attributes {dimension_semantics = [#tpu.dimension_semantics<parallel>], iteration_bounds = array<i64: 1>, scalar_prefetch = 0 : i64, scratch_operands = 0 : i64, tpu.core_type = #tpu.core_type<tc>, window_params = [{transform_indices = @transform_0, window_bounds = array<i64: 8, 32>}, {transform_indices = @transform_1, window_bounds = array<i64: 8, 32>}, {pipeline_mode = #tpu.pipeline_mode<synchronous>, transform_indices = @transform_2, window_bounds = array<i64: 32, 128>}, {pipeline_mode = #tpu.pipeline_mode<synchronous>, transform_indices = @transform_3, window_bounds = array<i64: 1, 128>}, {pipeline_mode = #tpu.pipeline_mode<synchronous>, transform_indices = @transform_4, window_bounds = array<i64: 32, 256>}, {pipeline_mode = #tpu.pipeline_mode<synchronous>, transform_indices = @transform_5, window_bounds = array<i64: 1, 256>}, {pipeline_mode = #tpu.pipeline_mode<synchronous>, transform_indices = @transform_6, window_bounds = array<i64: 128, 16>}, {pipeline_mode = #tpu.pipeline_mode<synchronous>, transform_indices = @transform_7, window_bounds = array<i64: 2, 16, 16>}, {pipeline_mode = #tpu.pipeline_mode<synchronous>, transform_indices = @transform_8, window_bounds = array<i64: 16, 16>}, {pipeline_mode = #tpu.pipeline_mode<synchronous>, transform_indices = @transform_9, window_bounds = array<i64: 16, 128>}, {pipeline_mode = #tpu.pipeline_mode<synchronous>, transform_indices = @transform_10, window_bounds = array<i64: 128, 32>}, {pipeline_mode = #tpu.pipeline_mode<synchronous>, transform_indices = @transform_11, window_bounds = array<i64: 1, 32>}, {transform_indices = @transform_12, window_bounds = array<i64: 8, 32>}]} {
    %c0 = arith.constant 0 : index
    %c0_0 = arith.constant 0 : index
    %0 = vector.load %arg1[%c0, %c0_0] : memref<8x32xf32, #tpu.memory_space<vmem>>, vector<8x32xf32>
    %1 = arith.truncf %0 : vector<8x32xf32> to vector<8x32xbf16>
    %c0_1 = arith.constant 0 : index
    %c0_2 = arith.constant 0 : index
    %2 = vector.load %arg2[%c0_1, %c0_2] : memref<8x32xf32, #tpu.memory_space<vmem>>, vector<8x32xf32>
    %3 = arith.truncf %2 : vector<8x32xf32> to vector<8x32xbf16>
    %c0_3 = arith.constant 0 : index
    %c0_4 = arith.constant 0 : index
    %4 = vector.load %arg3[%c0_3, %c0_4] : memref<32x128xbf16, #tpu.memory_space<vmem>>, vector<32x128xbf16>
    %cst = arith.constant dense<0.000000e+00> : vector<8x128xf32>
    %5 = tpu.matmul %1, %4, %cst {dimension_numbers = #tpu.dot_dimension_numbers<[1], [0], [0], [1], [0, 0, 1, 1], [], []>} : vector<8x32xbf16>, vector<32x128xbf16>, vector<8x128xf32> -> vector<8x128xf32>
    %c0_5 = arith.constant 0 : index
    %c0_6 = arith.constant 0 : index
    %6 = vector.load %arg4[%c0_5, %c0_6] : memref<1x128xf32, #tpu.memory_space<vmem>>, vector<1x128xf32>
    %7 = vector.broadcast %6 : vector<1x128xf32> to vector<8x128xf32>
    %8 = arith.addf %5, %7 : vector<8x128xf32>
    %c0_7 = arith.constant 0 : index
    %c0_8 = arith.constant 0 : index
    %9 = vector.load %arg5[%c0_7, %c0_8] : memref<32x256xbf16, #tpu.memory_space<vmem>>, vector<32x256xbf16>
    %cst_9 = arith.constant dense<0.000000e+00> : vector<8x256xf32>
    %10 = tpu.matmul %3, %9, %cst_9 {dimension_numbers = #tpu.dot_dimension_numbers<[1], [0], [0], [1], [0, 0, 1, 1], [], []>} : vector<8x32xbf16>, vector<32x256xbf16>, vector<8x256xf32> -> vector<8x256xf32>
    %c0_10 = arith.constant 0 : index
    %c0_11 = arith.constant 0 : index
    %11 = vector.load %arg6[%c0_10, %c0_11] : memref<1x256xf32, #tpu.memory_space<vmem>>, vector<1x256xf32>
    %12 = vector.broadcast %11 : vector<1x256xf32> to vector<8x256xf32>
    %13 = arith.addf %10, %12 : vector<8x256xf32>
    %14 = vector.extract_strided_slice %13 {offsets = [0, 0], sizes = [8, 128], strides = [1, 1]} : vector<8x256xf32> to vector<8x128xf32>
    %15 = vector.extract_strided_slice %13 {offsets = [0, 128], sizes = [8, 128], strides = [1, 1]} : vector<8x256xf32> to vector<8x128xf32>
    %16 = arith.mulf %8, %14 : vector<8x128xf32>
    %c0_12 = arith.constant 0 : index
    %c0_13 = arith.constant 0 : index
    %17 = vector.load %arg7[%c0_12, %c0_13] : memref<128x16xf32, #tpu.memory_space<vmem>>, vector<128x16xf32>
    %cst_14 = arith.constant dense<0.000000e+00> : vector<8x16xf32>
    %18 = tpu.matmul %16, %17, %cst_14 {dimension_numbers = #tpu.dot_dimension_numbers<[1], [0], [0], [1], [0, 0, 1, 1], [], []>} : vector<8x128xf32>, vector<128x16xf32>, vector<8x16xf32> -> vector<8x16xf32>
    %c0_15 = arith.constant 0 : index
    %c0_16 = arith.constant 0 : index
    %c0_17 = arith.constant 0 : index
    %19 = vector.load %arg8[%c0_15, %c0_16, %c0_17] : memref<2x16x16xf32, #tpu.memory_space<vmem>>, vector<1x16x16xf32>
    %20 = vector.shape_cast %19 : vector<1x16x16xf32> to vector<16x16xf32>
    %cst_18 = arith.constant dense<0.000000e+00> : vector<8x16xf32>
    %21 = tpu.matmul %18, %20, %cst_18 {dimension_numbers = #tpu.dot_dimension_numbers<[1], [0], [0], [1], [0, 0, 1, 1], [], []>} : vector<8x16xf32>, vector<16x16xf32>, vector<8x16xf32> -> vector<8x16xf32>
    %22 = arith.maximumf %18, %21 : vector<8x16xf32>
    %c1 = arith.constant 1 : index
    %c0_19 = arith.constant 0 : index
    %c0_20 = arith.constant 0 : index
    %23 = vector.load %arg8[%c1, %c0_19, %c0_20] : memref<2x16x16xf32, #tpu.memory_space<vmem>>, vector<1x16x16xf32>
    %24 = vector.shape_cast %23 : vector<1x16x16xf32> to vector<16x16xf32>
    %cst_21 = arith.constant dense<0.000000e+00> : vector<8x16xf32>
    %25 = tpu.matmul %22, %24, %cst_21 {dimension_numbers = #tpu.dot_dimension_numbers<[1], [0], [0], [1], [0, 0, 1, 1], [], []>} : vector<8x16xf32>, vector<16x16xf32>, vector<8x16xf32> -> vector<8x16xf32>
    %26 = arith.maximumf %22, %25 : vector<8x16xf32>
    %27 = arith.subf %18, %26 : vector<8x16xf32>
    %28 = math.exp %27 : vector<8x16xf32>
    %c0_22 = arith.constant 0 : index
    %c0_23 = arith.constant 0 : index
    %29 = vector.load %arg9[%c0_22, %c0_23] : memref<16x16xf32, #tpu.memory_space<vmem>>, vector<16x16xf32>
    %cst_24 = arith.constant dense<0.000000e+00> : vector<8x16xf32>
    %30 = tpu.matmul %28, %29, %cst_24 {dimension_numbers = #tpu.dot_dimension_numbers<[1], [0], [0], [1], [0, 0, 1, 1], [], []>} : vector<8x16xf32>, vector<16x16xf32>, vector<8x16xf32> -> vector<8x16xf32>
    %31 = tpu.reciprocal %30 {approx = true} : vector<8x16xf32> -> vector<8x16xf32>
    %32 = arith.mulf %28, %31 : vector<8x16xf32>
    %c0_25 = arith.constant 0 : index
    %c0_26 = arith.constant 0 : index
    %33 = vector.load %arg10[%c0_25, %c0_26] : memref<16x128xf32, #tpu.memory_space<vmem>>, vector<16x128xf32>
    %cst_27 = arith.constant dense<0.000000e+00> : vector<8x128xf32>
    %34 = tpu.matmul %32, %33, %cst_27 {dimension_numbers = #tpu.dot_dimension_numbers<[1], [0], [0], [1], [0, 0, 1, 1], [], []>} : vector<8x16xf32>, vector<16x128xf32>, vector<8x128xf32> -> vector<8x128xf32>
    %35 = arith.mulf %34, %15 : vector<8x128xf32>
    %36 = arith.truncf %35 : vector<8x128xf32> to vector<8x128xbf16>
    %c0_28 = arith.constant 0 : index
    %c0_29 = arith.constant 0 : index
    %37 = vector.load %arg11[%c0_28, %c0_29] : memref<128x32xbf16, #tpu.memory_space<vmem>>, vector<128x32xbf16>
    %cst_30 = arith.constant dense<0.000000e+00> : vector<8x32xf32>
    %38 = tpu.matmul %36, %37, %cst_30 {dimension_numbers = #tpu.dot_dimension_numbers<[1], [0], [0], [1], [0, 0, 1, 1], [], []>} : vector<8x128xbf16>, vector<128x32xbf16>, vector<8x32xf32> -> vector<8x32xf32>
    %c0_31 = arith.constant 0 : index
    %c0_32 = arith.constant 0 : index
    %39 = vector.load %arg12[%c0_31, %c0_32] : memref<1x32xf32, #tpu.memory_space<vmem>>, vector<1x32xf32>
    %40 = vector.broadcast %39 : vector<1x32xf32> to vector<8x32xf32>
    %41 = arith.addf %38, %40 : vector<8x32xf32>
    %c0_33 = arith.constant 0 : index
    %c0_34 = arith.constant 0 : index
    %42 = vector.load %arg13[%c0_33, %c0_34] : memref<8x32xf32, #tpu.memory_space<vmem>>, vector<8x32xf32>
    tpu.vector_store %arg13[%c0_33, %c0_34], %41 {strides = array<i32>} : memref<8x32xf32, #tpu.memory_space<vmem>>, vector<8x32xf32>,
    return
  }
  func.func @transform_0(%arg0: i32) -> (i32, i32) {
    %c0_i32 = arith.constant 0 : i32
    %c0_i32_0 = arith.constant 0 : i32
    return %arg0, %c0_i32 : i32, i32
  }
  func.func @transform_1(%arg0: i32) -> (i32, i32) {
    %c0_i32 = arith.constant 0 : i32
    %c0_i32_0 = arith.constant 0 : i32
    return %arg0, %c0_i32 : i32, i32
  }
  func.func @transform_2(%arg0: i32) -> (i32, i32) {
    %c0_i32 = arith.constant 0 : i32
    %c0_i32_0 = arith.constant 0 : i32
    %c0_i32_1 = arith.constant 0 : i32
    return %c0_i32, %c0_i32_0 : i32, i32
  }
  func.func @transform_3(%arg0: i32) -> (i32, i32) {
    %c0_i32 = arith.constant 0 : i32
    %c0_i32_0 = arith.constant 0 : i32
    %c0_i32_1 = arith.constant 0 : i32
    return %c0_i32, %c0_i32_0 : i32, i32
  }
  func.func @transform_4(%arg0: i32) -> (i32, i32) {
    %c0_i32 = arith.constant 0 : i32
    %c0_i32_0 = arith.constant 0 : i32
    %c0_i32_1 = arith.constant 0 : i32
    return %c0_i32, %c0_i32_0 : i32, i32
  }
  func.func @transform_5(%arg0: i32) -> (i32, i32) {
    %c0_i32 = arith.constant 0 : i32
    %c0_i32_0 = arith.constant 0 : i32
    %c0_i32_1 = arith.constant 0 : i32
    return %c0_i32, %c0_i32_0 : i32, i32
  }
  func.func @transform_6(%arg0: i32) -> (i32, i32) {
    %c0_i32 = arith.constant 0 : i32
    %c0_i32_0 = arith.constant 0 : i32
    %c0_i32_1 = arith.constant 0 : i32
    return %c0_i32, %c0_i32_0 : i32, i32
  }
  func.func @transform_7(%arg0: i32) -> (i32, i32, i32) {
    %c0_i32 = arith.constant 0 : i32
    %c0_i32_0 = arith.constant 0 : i32
    %c0_i32_1 = arith.constant 0 : i32
    %c0_i32_2 = arith.constant 0 : i32
    return %c0_i32, %c0_i32_0, %c0_i32_1 : i32, i32, i32
  }
  func.func @transform_8(%arg0: i32) -> (i32, i32) {
    %c0_i32 = arith.constant 0 : i32
    %c0_i32_0 = arith.constant 0 : i32
    %c0_i32_1 = arith.constant 0 : i32
    return %c0_i32, %c0_i32_0 : i32, i32
  }
  func.func @transform_9(%arg0: i32) -> (i32, i32) {
    %c0_i32 = arith.constant 0 : i32
    %c0_i32_0 = arith.constant 0 : i32
    %c0_i32_1 = arith.constant 0 : i32
    return %c0_i32, %c0_i32_0 : i32, i32
  }
  func.func @transform_10(%arg0: i32) -> (i32, i32) {
    %c0_i32 = arith.constant 0 : i32
    %c0_i32_0 = arith.constant 0 : i32
    %c0_i32_1 = arith.constant 0 : i32
    return %c0_i32, %c0_i32_0 : i32, i32
  }
  func.func @transform_11(%arg0: i32) -> (i32, i32) {
    %c0_i32 = arith.constant 0 : i32
    %c0_i32_0 = arith.constant 0 : i32
    %c0_i32_1 = arith.constant 0 : i32
    return %c0_i32, %c0_i32_0 : i32, i32
  }
  func.func @transform_12(%arg0: i32) -> (i32, i32) {
    %c0_i32 = arith.constant 0 : i32
    %c0_i32_0 = arith.constant 0 : i32
    return %arg0, %c0_i32 : i32, i32
  }
}

</mosaic_0001>

<llo_original>
// kernel: tpu_custom_call.1
$region0: #{tpu_custom_call.1}
  #allocation0 [shape = 'u32[]', space=smem, size = 0x4, offset = 0x4, fixed_abs, tag = 'smem constant byte address 0x4 - core index']
  #allocation1 [shape = 'u32[144,128]{1,0:T(1,128)}', space=vmem, size = 0x12000, scoped, tag = 'internal scratch']
  %s0 = inlined_call_operand.vmem [shape: f32[8,32], index: 0, kind: input, shape index: {}]
  %s1 = inlined_call_operand.vmem [shape: f32[8,32], index: 1, kind: input, shape index: {}]
  %s2 = inlined_call_operand.vmem [shape: bf16[32,128], index: 2, kind: input, shape index: {}]
  %s3 = inlined_call_operand.vmem [shape: f32[1,128], index: 3, kind: input, shape index: {}]
  %s4 = inlined_call_operand.vmem [shape: bf16[32,256], index: 4, kind: input, shape index: {}]
  %s5 = inlined_call_operand.vmem [shape: f32[1,256], index: 5, kind: input, shape index: {}]
  %s6 = inlined_call_operand.vmem [shape: f32[128,16], index: 6, kind: input, shape index: {}]
  %s7 = inlined_call_operand.vmem [shape: f32[2,16,16], index: 7, kind: input, shape index: {}]
  %s8 = inlined_call_operand.vmem [shape: f32[16,16], index: 8, kind: input, shape index: {}]
  %s9 = inlined_call_operand.vmem [shape: f32[16,128], index: 9, kind: input, shape index: {}]
  %s10 = inlined_call_operand.vmem [shape: bf16[128,32], index: 10, kind: input, shape index: {}]
  %s11 = inlined_call_operand.vmem [shape: f32[1,32], index: 11, kind: input, shape index: {}]
  %s12 = inlined_call_operand.hbm [shape: f32[8,32], index: 12, kind: output, shape index: {}]
  %s13 = sld [smem:[#allocation0]]
  $region58: #{tpu_custom_call.1} parent=0
    _
  %s15 = ssub.s32 1, %s13
  %s16 = scalar_select 0, %s15, %s13
  $region1: #{tpu_custom_call.1} parent=0
    #allocation2 [shape = 'u8[4096]{0}', space=vmem, size = 0x1000, scoped, tag = 'output window, operand 0, single buffered']
    #allocation3 [shape = 's32[1]{0}', space=sflag, size = 0x4, scoped, tag = 'scoped memory for tpu_custom_call.1']
    %17 = vsyncpa [#allocation3], 0
    // Predicated region
    $region2: #{tpu_custom_call.1} parent=1 // pred_check
      _
    $region3: #{tpu_custom_call.1} parent=1 // pred_check_branch
      %19 = sbr.rel (0) target = $region5
    $region4: #{tpu_custom_call.1} parent=1 // pred_region
      _
    $region5: #{tpu_custom_call.1} parent=1 // pred_fallthru
      _
    // Predicated region
    $region6: #{tpu_custom_call.1} parent=1 // pred_check
      _
    $region7: #{tpu_custom_call.1} parent=1 // pred_check_branch
      %21 = sbr.rel (0) target = $region9
    $region8: #{tpu_custom_call.1} parent=1 // pred_region
      _
    $region9: #{tpu_custom_call.1} parent=1 // pred_fallthru
      _
    // Predicated region
    $region10: #{tpu_custom_call.1} parent=1 // pred_check
      _
    $region11: #{tpu_custom_call.1} parent=1 // pred_check_branch
      %23 = sbr.rel (0) target = $region13
    $region12: #{tpu_custom_call.1} parent=1 // pred_region
      _
    $region13: #{tpu_custom_call.1} parent=1 // pred_fallthru
      _
    // Predicated region
    $region14: #{tpu_custom_call.1} parent=1 // pred_check
      _
    $region15: #{tpu_custom_call.1} parent=1 // pred_check_branch
      %25 = sbr.rel (0) target = $region17
    $region16: #{tpu_custom_call.1} parent=1 // pred_region
      _
    $region17: #{tpu_custom_call.1} parent=1 // pred_fallthru
      _
    // Predicated region
    $region18: #{tpu_custom_call.1} parent=1 // pred_check
      _
    $region19: #{tpu_custom_call.1} parent=1 // pred_check_branch
      %27 = sbr.rel (0) target = $region21
    $region20: #{tpu_custom_call.1} parent=1 // pred_region
      _
    $region21: #{tpu_custom_call.1} parent=1 // pred_fallthru
      _
    // Predicated region
    $region22: #{tpu_custom_call.1} parent=1 // pred_check
      _
    $region23: #{tpu_custom_call.1} parent=1 // pred_check_branch
      %29 = sbr.rel (0) target = $region25
    $region24: #{tpu_custom_call.1} parent=1 // pred_region
      _
    $region25: #{tpu_custom_call.1} parent=1 // pred_fallthru
      _
    // Predicated region
    $region26: #{tpu_custom_call.1} parent=1 // pred_check
      _
    $region27: #{tpu_custom_call.1} parent=1 // pred_check_branch
      %31 = sbr.rel (0) target = $region29
    $region28: #{tpu_custom_call.1} parent=1 // pred_region
      _
    $region29: #{tpu_custom_call.1} parent=1 // pred_fallthru
      _
    // Predicated region
    $region30: #{tpu_custom_call.1} parent=1 // pred_check
      _
    $region31: #{tpu_custom_call.1} parent=1 // pred_check_branch
      %33 = sbr.rel (0) target = $region33
    $region32: #{tpu_custom_call.1} parent=1 // pred_region
      _
    $region33: #{tpu_custom_call.1} parent=1 // pred_fallthru
      _
    // Predicated region
    $region34: #{tpu_custom_call.1} parent=1 // pred_check
      _
    $region35: #{tpu_custom_call.1} parent=1 // pred_check_branch
      %35 = sbr.rel (0) target = $region37
    $region36: #{tpu_custom_call.1} parent=1 // pred_region
      _
    $region37: #{tpu_custom_call.1} parent=1 // pred_fallthru
      _
    // Predicated region
    $region38: #{tpu_custom_call.1} parent=1 // pred_check
      _
    $region39: #{tpu_custom_call.1} parent=1 // pred_check_branch
      %37 = sbr.rel (0) target = $region41
    $region40: #{tpu_custom_call.1} parent=1 // pred_region
      _
    $region41: #{tpu_custom_call.1} parent=1 // pred_fallthru
      _
    // Predicated region
    $region42: #{tpu_custom_call.1} parent=1 // pred_check
      _
    $region43: #{tpu_custom_call.1} parent=1 // pred_check_branch
      %39 = sbr.rel (0) target = $region45
    $region44: #{tpu_custom_call.1} parent=1 // pred_region
      _
    $region45: #{tpu_custom_call.1} parent=1 // pred_fallthru
      _
    // Predicated region
    $region46: #{tpu_custom_call.1} parent=1 // pred_check
      _
    $region47: #{tpu_custom_call.1} parent=1 // pred_check_branch
      %41 = sbr.rel (0) target = $region49
    $region48: #{tpu_custom_call.1} parent=1 // pred_region
      _
    $region49: #{tpu_custom_call.1} parent=1 // pred_fallthru
      _
    %v43 = vld [vmem:[%s0] sm:$0xff]
    %v44 = vpack.c.bf16 %v43, %v43
    %v45 = vld [vmem:[%s1] sm:$0xff]
    %v46 = vpack.c.bf16 %v45, %v45
    %v47 = vld [vmem:[%s2] sm:$0xf]
    %v48 = vld [vmem:[%s2 + $0x4] sm:$0xf]
    %v49 = vld [vmem:[%s2 + $0x8] sm:$0xf]
    %v50 = vld [vmem:[%s2 + $0xc] sm:$0xf]
    %v51 = vld [vmem:[%s3] sm:$0x1]
    %v53 = vlaneseq
    %v54 = vshrl.u32 %v53, 7
    %v55 = vsub.s32 0, %v54
    %v56 = vrot.slane %v51, %v55
    %v62 = vunpack.c.l.b16 %v47
    %v63 = vunpack.c.l.b16 %v48
    %v64 = vunpack.c.l.b16 %v49
    %v65 = vunpack.c.l.b16 %v50
    %v66 = vpack.c.b16 %v63, %v62
    %v67 = vpack.c.b16 %v65, %v64
    %vm70 = vcmask 261120
    %v72 = vsel %vm70, %v44, 0
    %74 = vmatprep.subr.bf16.mxu0 0
    %75 = vmatpush1.bf16.msra.mxu0 %v66
    %76 = vmatprep.subr.bf16.mxu0 0
    %77 = vmatpush1.bf16.msra.mxu0 %v67
    %78 = vmatprep.subr.bf16.mxu0 0
    %79 = vmatpush1.bf16.msra.mxu0 0
    %80 = vmatprep.subr.bf16.mxu0 0
    %81 = vmatpush1.bf16.msra.mxu0 0
    %82 = vmatprep.subr.bf16.mxu0 0
    %83 = vmatpush1.bf16.msra.mxu0 0
    %84 = vmatprep.subr.bf16.mxu0 0
    %85 = vmatpush1.bf16.msra.mxu0 0
    %86 = vmatprep.subr.bf16.mxu0 0
    %87 = vmatpush1.bf16.msra.mxu0 0
    %88 = vmatprep.subr.bf16.mxu0 0
    %89 = vmatpush1.bf16.msra.mxu0 0
    %90 = vmatprep.subr.bf16.mxu0 0
    %91 = vmatpush1.bf16.msra.mxu0 0
    %92 = vmatprep.subr.bf16.mxu0 0
    %93 = vmatpush1.bf16.msra.mxu0 0
    %94 = vmatprep.subr.bf16.mxu0 0
    %95 = vmatpush1.bf16.msra.mxu0 0
    %96 = vmatprep.subr.bf16.mxu0 0
    %97 = vmatpush1.bf16.msra.mxu0 0
    %98 = vmatprep.subr.bf16.mxu0 0
    %99 = vmatpush1.bf16.msra.mxu0 0
    %100 = vmatprep.subr.bf16.mxu0 0
    %101 = vmatpush1.bf16.msra.mxu0 0
    %102 = vmatprep.subr.bf16.mxu0 0
    %103 = vmatpush1.bf16.msra.mxu0 0
    %104 = vmatprep.subr.bf16.mxu0 0
    %105 = vmatpush1.bf16.msra.mxu0 0
    %106 = vmatprep.mubr.bf16.mxu0 0
    %107 = vmatmul.mubr.bf16.gmra.mrb[0].mxu0 %v72
    %v108 = vpop.f32.mrb[0].mxu0
    %v109 = vadd.f32 %v56, %v108
    %v110 = vpop.f32.mrb[0].mxu0
    %v111 = vpop.f32.mrb[0].mxu0
    %v112 = vpop.f32.mrb[0].mxu0
    %113 = vdwg.mxu0
    %v114 = vld [vmem:[%s4] sm:$0xff]
    %v115 = vld [vmem:[%s4 + $0x8] sm:$0xff]
    %v116 = vld [vmem:[%s4 + $0x10] sm:$0xff]
    %v117 = vld [vmem:[%s4 + $0x18] sm:$0xff]
    %v118 = vld [vmem:[%s5] sm:$0x3]
    %v120 = vlaneseq
    %v121 = vshrl.u32 %v120, 7
    %v122 = vsub.s32 0, %v121
    %v123 = vrot.slane %v118, %v122
    %v124 = vlaneseq
    %v125 = vshrl.u32 %v124, 7
    %v126 = vsub.s32 1, %v125
    %v127 = vrot.slane %v118, %v126
    %v134 = vunpack.c.l.b16 %v114
    %v135 = vunpack.c.h.b16 %v114
    %v136 = vunpack.c.l.b16 %v115
    %v137 = vunpack.c.h.b16 %v115
    %v138 = vunpack.c.l.b16 %v116
    %v139 = vunpack.c.h.b16 %v116
    %v140 = vunpack.c.l.b16 %v117
    %v141 = vunpack.c.h.b16 %v117
    %v142 = vpack.c.b16 %v136, %v134
    %v143 = vpack.c.b16 %v137, %v135
    %v144 = vpack.c.b16 %v140, %v138
    %v145 = vpack.c.b16 %v141, %v139
    %v151 = vsel %vm70, %v46, 0
    %153 = vmatprep.subr.bf16.mxu0 %v143
    %154 = vmatpush1.bf16.msra.mxu0 %v142
    %155 = vmatprep.subr.bf16.mxu0 %v145
    %156 = vmatpush1.bf16.msra.mxu0 %v144
    %157 = vmatprep.subr.bf16.mxu0 0
    %158 = vmatpush1.bf16.msra.mxu0 0
    %159 = vmatprep.subr.bf16.mxu0 0
    %160 = vmatpush1.bf16.msra.mxu0 0
    %161 = vmatprep.subr.bf16.mxu0 0
    %162 = vmatpush1.bf16.msra.mxu0 0
    %163 = vmatprep.subr.bf16.mxu0 0
    %164 = vmatpush1.bf16.msra.mxu0 0
    %165 = vmatprep.subr.bf16.mxu0 0
    %166 = vmatpush1.bf16.msra.mxu0 0
    %167 = vmatprep.subr.bf16.mxu0 0
    %168 = vmatpush1.bf16.msra.mxu0 0
    %169 = vmatprep.subr.bf16.mxu0 0
    %170 = vmatpush1.bf16.msra.mxu0 0
    %171 = vmatprep.subr.bf16.mxu0 0
    %172 = vmatpush1.bf16.msra.mxu0 0
    %173 = vmatprep.subr.bf16.mxu0 0
    %174 = vmatpush1.bf16.msra.mxu0 0
    %175 = vmatprep.subr.bf16.mxu0 0
    %176 = vmatpush1.bf16.msra.mxu0 0
    %177 = vmatprep.subr.bf16.mxu0 0
    %178 = vmatpush1.bf16.msra.mxu0 0
    %179 = vmatprep.subr.bf16.mxu0 0
    %180 = vmatpush1.bf16.msra.mxu0 0
    %181 = vmatprep.subr.bf16.mxu0 0
    %182 = vmatpush1.bf16.msra.mxu0 0
    %183 = vmatprep.subr.bf16.mxu0 0
    %184 = vmatpush1.bf16.msra.mxu0 0
    %185 = vmatprep.mubr.bf16.mxu0 0
    %186 = vmatmul.mubr.bf16.gmra.mrb[0].mxu0 %v151
    %v187 = vpop.f32.mrb[0].mxu0
    %v188 = vadd.f32 %v123, %v187
    %v189 = vpop.f32.mrb[0].mxu0
    %v190 = vadd.f32 %v127, %v189
    %v191 = vpop.f32.mrb[0].mxu0
    %v192 = vpop.f32.mrb[0].mxu0
    %193 = vdwg.mxu0
    %v194 = vmul.f32 %v109, %v188
    %v195 = vld [vmem:[%s6] sm:$0xff]
    %v196 = vld [vmem:[%s6 + $0x8] sm:$0xff]
    %v197 = vld [vmem:[%s6 + $0x10] sm:$0xff]
    %v198 = vld [vmem:[%s6 + $0x18] sm:$0xff]
    %v199 = vld [vmem:[%s6 + $0x20] sm:$0xff]
    %v200 = vld [vmem:[%s6 + $0x28] sm:$0xff]
    %v201 = vld [vmem:[%s6 + $0x30] sm:$0xff]
    %v202 = vld [vmem:[%s6 + $0x38] sm:$0xff]
    %v203 = vld [vmem:[%s6 + $0x40] sm:$0xff]
    %v204 = vld [vmem:[%s6 + $0x48] sm:$0xff]
    %v205 = vld [vmem:[%s6 + $0x50] sm:$0xff]
    %v206 = vld [vmem:[%s6 + $0x58] sm:$0xff]
    %v207 = vld [vmem:[%s6 + $0x60] sm:$0xff]
    %v208 = vld [vmem:[%s6 + $0x68] sm:$0xff]
    %v209 = vld [vmem:[%s6 + $0x70] sm:$0xff]
    %v210 = vld [vmem:[%s6 + $0x78] sm:$0xff]
    %211 = vmatprep.subr.mxu0 0.0
    %212 = vmatpush1.msra.mxu0 %v195
    %213 = vmatprep.subr.mxu0 0.0
    %214 = vmatpush1.msra.mxu0 %v196
    %215 = vmatprep.subr.mxu0 0.0
    %216 = vmatpush1.msra.mxu0 %v197
    %217 = vmatprep.subr.mxu0 0.0
    %218 = vmatpush1.msra.mxu0 %v198
    %219 = vmatprep.subr.mxu0 0.0
    %220 = vmatpush1.msra.mxu0 %v199
    %221 = vmatprep.subr.mxu0 0.0
    %222 = vmatpush1.msra.mxu0 %v200
    %223 = vmatprep.subr.mxu0 0.0
    %224 = vmatpush1.msra.mxu0 %v201
    %225 = vmatprep.subr.mxu0 0.0
    %226 = vmatpush1.msra.mxu0 %v202
    %227 = vmatprep.subr.mxu0 0.0
    %228 = vmatpush1.msra.mxu0 %v203
    %229 = vmatprep.subr.mxu0 0.0
    %230 = vmatpush1.msra.mxu0 %v204
    %231 = vmatprep.subr.mxu0 0.0
    %232 = vmatpush1.msra.mxu0 %v205
    %233 = vmatprep.subr.mxu0 0.0
    %234 = vmatpush1.msra.mxu0 %v206
    %235 = vmatprep.subr.mxu0 0.0
    %236 = vmatpush1.msra.mxu0 %v207
    %237 = vmatprep.subr.mxu0 0.0
    %238 = vmatpush1.msra.mxu0 %v208
    %239 = vmatprep.subr.mxu0 0.0
    %240 = vmatpush1.msra.mxu0 %v209
    %241 = vmatprep.subr.mxu0 0.0
    %242 = vmatpush1.msra.mxu0 %v210
    %243 = vmatprep.subr.mxu0 0.0
    %244 = vmatpush1.msra.mxu0 0.0
    %245 = vmatprep.subr.mxu0 0.0
    %246 = vmatpush1.msra.mxu0 0.0
    %247 = vmatprep.subr.mxu0 0.0
    %248 = vmatpush1.msra.mxu0 0.0
    %249 = vmatprep.subr.mxu0 0.0
    %250 = vmatpush1.msra.mxu0 0.0
    %251 = vmatprep.subr.mxu0 0.0
    %252 = vmatpush1.msra.mxu0 0.0
    %253 = vmatprep.subr.mxu0 0.0
    %254 = vmatpush1.msra.mxu0 0.0
    %255 = vmatprep.subr.mxu0 0.0
    %256 = vmatpush1.msra.mxu0 0.0
    %257 = vmatprep.subr.mxu0 0.0
    %258 = vmatpush1.msra.mxu0 0.0
    %259 = vmatprep.subr.mxu0 0.0
    %260 = vmatpush1.msra.mxu0 0.0
    %261 = vmatprep.subr.mxu0 0.0
    %262 = vmatpush1.msra.mxu0 0.0
    %263 = vmatprep.subr.mxu0 0.0
    %264 = vmatpush1.msra.mxu0 0.0
    %265 = vmatprep.subr.mxu0 0.0
    %266 = vmatpush1.msra.mxu0 0.0
    %267 = vmatprep.subr.mxu0 0.0
    %268 = vmatpush1.msra.mxu0 0.0
    %269 = vmatprep.subr.mxu0 0.0
    %270 = vmatpush1.msra.mxu0 0.0
    %271 = vmatprep.subr.mxu0 0.0
    %272 = vmatpush1.msra.mxu0 0.0
    %273 = vmatprep.subr.mxu0 0.0
    %274 = vmatpush1.msra.mxu0 0.0
    %275 = vmatprep.mubr.f32.mxu0 0.0
    %276 = vmatmul.mubr.f32.gmra.mrb[0].mxu0 %v194
    %v277 = vpop.f32.mrb[0].mxu0
    %v278 = vadd.f32 0.0, %v277
    %v279 = vpop.f32.mrb[0].mxu0
    %280 = vdwg.mxu0
    %v281 = vld [vmem:[%s7] sm:$0xff]
    %v282 = vld [vmem:[%s7 + $0x8] sm:$0xff]
    %vm283 = vcmask 130048
    %v285 = vsel %vm283, %v278, 0
    %287 = vmatprep.subr.mxu0 0.0
    %288 = vmatpush1.msra.mxu0 %v281
    %289 = vmatprep.subr.mxu0 0.0
    %290 = vmatpush1.msra.mxu0 %v282
    %291 = vmatprep.subr.mxu0 0.0
    %292 = vmatpush1.msra.mxu0 0.0
    %293 = vmatprep.subr.mxu0 0.0
    %294 = vmatpush1.msra.mxu0 0.0
    %295 = vmatprep.subr.mxu0 0.0
    %296 = vmatpush1.msra.mxu0 0.0
    %297 = vmatprep.subr.mxu0 0.0
    %298 = vmatpush1.msra.mxu0 0.0
    %299 = vmatprep.subr.mxu0 0.0
    %300 = vmatpush1.msra.mxu0 0.0
    %301 = vmatprep.subr.mxu0 0.0
    %302 = vmatpush1.msra.mxu0 0.0
    %303 = vmatprep.subr.mxu0 0.0
    %304 = vmatpush1.msra.mxu0 0.0
    %305 = vmatprep.subr.mxu0 0.0
    %306 = vmatpush1.msra.mxu0 0.0
    %307 = vmatprep.subr.mxu0 0.0
    %308 = vmatpush1.msra.mxu0 0.0
    %309 = vmatprep.subr.mxu0 0.0
    %310 = vmatpush1.msra.mxu0 0.0
    %311 = vmatprep.subr.mxu0 0.0
    %312 = vmatpush1.msra.mxu0 0.0
    %313 = vmatprep.subr.mxu0 0.0
    %314 = vmatpush1.msra.mxu0 0.0
    %315 = vmatprep.subr.mxu0 0.0
    %316 = vmatpush1.msra.mxu0 0.0
    %317 = vmatprep.subr.mxu0 0.0
    %318 = vmatpush1.msra.mxu0 0.0
    %319 = vmatprep.subr.mxu0 0.0
    %320 = vmatpush1.msra.mxu0 0.0
    %321 = vmatprep.subr.mxu0 0.0
    %322 = vmatpush1.msra.mxu0 0.0
    %323 = vmatprep.subr.mxu0 0.0
    %324 = vmatpush1.msra.mxu0 0.0
    %325 = vmatprep.subr.mxu0 0.0
    %326 = vmatpush1.msra.mxu0 0.0
    %327 = vmatprep.subr.mxu0 0.0
    %328 = vmatpush1.msra.mxu0 0.0
    %329 = vmatprep.subr.mxu0 0.0
    %330 = vmatpush1.msra.mxu0 0.0
    %331 = vmatprep.subr.mxu0 0.0
    %332 = vmatpush1.msra.mxu0 0.0
    %333 = vmatprep.subr.mxu0 0.0
    %334 = vmatpush1.msra.mxu0 0.0
    %335 = vmatprep.subr.mxu0 0.0
    %336 = vmatpush1.msra.mxu0 0.0
    %337 = vmatprep.subr.mxu0 0.0
    %338 = vmatpush1.msra.mxu0 0.0
    %339 = vmatprep.subr.mxu0 0.0
    %340 = vmatpush1.msra.mxu0 0.0
    %341 = vmatprep.subr.mxu0 0.0
    %342 = vmatpush1.msra.mxu0 0.0
    %343 = vmatprep.subr.mxu0 0.0
    %344 = vmatpush1.msra.mxu0 0.0
    %345 = vmatprep.subr.mxu0 0.0
    %346 = vmatpush1.msra.mxu0 0.0
    %347 = vmatprep.subr.mxu0 0.0
    %348 = vmatpush1.msra.mxu0 0.0
    %349 = vmatprep.subr.mxu0 0.0
    %350 = vmatpush1.msra.mxu0 0.0
    %351 = vmatprep.mubr.f32.mxu0 0.0
    %352 = vmatmul.mubr.f32.gmra.mrb[0].mxu0 %v285
    %v353 = vpop.f32.mrb[0].mxu0
    %v354 = vadd.f32 0.0, %v353
    %v355 = vpop.f32.mrb[0].mxu0
    %356 = vdwg.mxu0
    %v357 = vmax.f32 %v278, %v354
    %s358 = scalar_lea.vmem %s7, 16
    %v359 = vld [vmem:[%s358] sm:$0xff]
    %v360 = vld [vmem:[%s358 + $0x8] sm:$0xff]
    %v362 = vsel %vm283, %v357, 0
    %364 = vmatprep.subr.mxu0 0.0
    %365 = vmatpush1.msra.mxu0 %v359
    %366 = vmatprep.subr.mxu0 0.0
    %367 = vmatpush1.msra.mxu0 %v360
    %368 = vmatprep.subr.mxu0 0.0
    %369 = vmatpush1.msra.mxu0 0.0
    %370 = vmatprep.subr.mxu0 0.0
    %371 = vmatpush1.msra.mxu0 0.0
    %372 = vmatprep.subr.mxu0 0.0
    %373 = vmatpush1.msra.mxu0 0.0
    %374 = vmatprep.subr.mxu0 0.0
    %375 = vmatpush1.msra.mxu0 0.0
    %376 = vmatprep.subr.mxu0 0.0
    %377 = vmatpush1.msra.mxu0 0.0
    %378 = vmatprep.subr.mxu0 0.0
    %379 = vmatpush1.msra.mxu0 0.0
    %380 = vmatprep.subr.mxu0 0.0
    %381 = vmatpush1.msra.mxu0 0.0
    %382 = vmatprep.subr.mxu0 0.0
    %383 = vmatpush1.msra.mxu0 0.0
    %384 = vmatprep.subr.mxu0 0.0
    %385 = vmatpush1.msra.mxu0 0.0
    %386 = vmatprep.subr.mxu0 0.0
    %387 = vmatpush1.msra.mxu0 0.0
    %388 = vmatprep.subr.mxu0 0.0
    %389 = vmatpush1.msra.mxu0 0.0
    %390 = vmatprep.subr.mxu0 0.0
    %391 = vmatpush1.msra.mxu0 0.0
    %392 = vmatprep.subr.mxu0 0.0
    %393 = vmatpush1.msra.mxu0 0.0
    %394 = vmatprep.subr.mxu0 0.0
    %395 = vmatpush1.msra.mxu0 0.0
    %396 = vmatprep.subr.mxu0 0.0
    %397 = vmatpush1.msra.mxu0 0.0
    %398 = vmatprep.subr.mxu0 0.0
    %399 = vmatpush1.msra.mxu0 0.0
    %400 = vmatprep.subr.mxu0 0.0
    %401 = vmatpush1.msra.mxu0 0.0
    %402 = vmatprep.subr.mxu0 0.0
    %403 = vmatpush1.msra.mxu0 0.0
    %404 = vmatprep.subr.mxu0 0.0
    %405 = vmatpush1.msra.mxu0 0.0
    %406 = vmatprep.subr.mxu0 0.0
    %407 = vmatpush1.msra.mxu0 0.0
    %408 = vmatprep.subr.mxu0 0.0
    %409 = vmatpush1.msra.mxu0 0.0
    %410 = vmatprep.subr.mxu0 0.0
    %411 = vmatpush1.msra.mxu0 0.0
    %412 = vmatprep.subr.mxu0 0.0
    %413 = vmatpush1.msra.mxu0 0.0
    %414 = vmatprep.subr.mxu0 0.0
    %415 = vmatpush1.msra.mxu0 0.0
    %416 = vmatprep.subr.mxu0 0.0
    %417 = vmatpush1.msra.mxu0 0.0
    %418 = vmatprep.subr.mxu0 0.0
    %419 = vmatpush1.msra.mxu0 0.0
    %420 = vmatprep.subr.mxu0 0.0
    %421 = vmatpush1.msra.mxu0 0.0
    %422 = vmatprep.subr.mxu0 0.0
    %423 = vmatpush1.msra.mxu0 0.0
    %424 = vmatprep.subr.mxu0 0.0
    %425 = vmatpush1.msra.mxu0 0.0
    %426 = vmatprep.subr.mxu0 0.0
    %427 = vmatpush1.msra.mxu0 0.0
    %428 = vmatprep.mubr.f32.mxu0 0.0
    %429 = vmatmul.mubr.f32.gmra.mrb[0].mxu0 %v362
    %v430 = vpop.f32.mrb[0].mxu0
    %v431 = vadd.f32 0.0, %v430
    %v432 = vpop.f32.mrb[0].mxu0
    %433 = vdwg.mxu0
    %v434 = vmax.f32 %v357, %v431
    %v435 = vsub.f32 %v278, %v434
    %v436 = vmul.f32 %v435, 1.442695
    %v437 = vpow.pop %v436
    %v438 = vld [vmem:[%s8] sm:$0xff]
    %v439 = vld [vmem:[%s8 + $0x8] sm:$0xff]
    %v441 = vsel %vm283, %v437, 0
    %443 = vmatprep.subr.mxu0 0.0
    %444 = vmatpush1.msra.mxu0 %v438
    %445 = vmatprep.subr.mxu0 0.0
    %446 = vmatpush1.msra.mxu0 %v439
    %447 = vmatprep.subr.mxu0 0.0
    %448 = vmatpush1.msra.mxu0 0.0
    %449 = vmatprep.subr.mxu0 0.0
    %450 = vmatpush1.msra.mxu0 0.0
    %451 = vmatprep.subr.mxu0 0.0
    %452 = vmatpush1.msra.mxu0 0.0
    %453 = vmatprep.subr.mxu0 0.0
    %454 = vmatpush1.msra.mxu0 0.0
    %455 = vmatprep.subr.mxu0 0.0
    %456 = vmatpush1.msra.mxu0 0.0
    %457 = vmatprep.subr.mxu0 0.0
    %458 = vmatpush1.msra.mxu0 0.0
    %459 = vmatprep.subr.mxu0 0.0
    %460 = vmatpush1.msra.mxu0 0.0
    %461 = vmatprep.subr.mxu0 0.0
    %462 = vmatpush1.msra.mxu0 0.0
    %463 = vmatprep.subr.mxu0 0.0
    %464 = vmatpush1.msra.mxu0 0.0
    %465 = vmatprep.subr.mxu0 0.0
    %466 = vmatpush1.msra.mxu0 0.0
    %467 = vmatprep.subr.mxu0 0.0
    %468 = vmatpush1.msra.mxu0 0.0
    %469 = vmatprep.subr.mxu0 0.0
    %470 = vmatpush1.msra.mxu0 0.0
    %471 = vmatprep.subr.mxu0 0.0
    %472 = vmatpush1.msra.mxu0 0.0
    %473 = vmatprep.subr.mxu0 0.0
    %474 = vmatpush1.msra.mxu0 0.0
    %475 = vmatprep.subr.mxu0 0.0
    %476 = vmatpush1.msra.mxu0 0.0
    %477 = vmatprep.subr.mxu0 0.0
    %478 = vmatpush1.msra.mxu0 0.0
    %479 = vmatprep.subr.mxu0 0.0
    %480 = vmatpush1.msra.mxu0 0.0
    %481 = vmatprep.subr.mxu0 0.0
    %482 = vmatpush1.msra.mxu0 0.0
    %483 = vmatprep.subr.mxu0 0.0
    %484 = vmatpush1.msra.mxu0 0.0
    %485 = vmatprep.subr.mxu0 0.0
    %486 = vmatpush1.msra.mxu0 0.0
    %487 = vmatprep.subr.mxu0 0.0
    %488 = vmatpush1.msra.mxu0 0.0
    %489 = vmatprep.subr.mxu0 0.0
    %490 = vmatpush1.msra.mxu0 0.0
    %491 = vmatprep.subr.mxu0 0.0
    %492 = vmatpush1.msra.mxu0 0.0
    %493 = vmatprep.subr.mxu0 0.0
    %494 = vmatpush1.msra.mxu0 0.0
    %495 = vmatprep.subr.mxu0 0.0
    %496 = vmatpush1.msra.mxu0 0.0
    %497 = vmatprep.subr.mxu0 0.0
    %498 = vmatpush1.msra.mxu0 0.0
    %499 = vmatprep.subr.mxu0 0.0
    %500 = vmatpush1.msra.mxu0 0.0
    %501 = vmatprep.subr.mxu0 0.0
    %502 = vmatpush1.msra.mxu0 0.0
    %503 = vmatprep.subr.mxu0 0.0
    %504 = vmatpush1.msra.mxu0 0.0
    %505 = vmatprep.subr.mxu0 0.0
    %506 = vmatpush1.msra.mxu0 0.0
    %507 = vmatprep.mubr.f32.mxu0 0.0
    %508 = vmatmul.mubr.f32.gmra.mrb[0].mxu0 %v441
    %v509 = vpop.f32.mrb[0].mxu0
    %v510 = vadd.f32 0.0, %v509
    %v511 = vpop.f32.mrb[0].mxu0
    %512 = vdwg.mxu0
    %v513 = vrcp.pop %v510
    %v514 = vmul.f32 %v437, %v513
    %v515 = vld [vmem:[%s9] sm:$0xff]
    %v516 = vld [vmem:[%s9 + $0x8] sm:$0xff]
    %v518 = vsel %vm283, %v514, 0
    %520 = vmatprep.subr.mxu0 0.0
    %521 = vmatpush1.msra.mxu0 %v515
    %522 = vmatprep.subr.mxu0 0.0
    %523 = vmatpush1.msra.mxu0 %v516
    %524 = vmatprep.subr.mxu0 0.0
    %525 = vmatpush1.msra.mxu0 0.0
    %526 = vmatprep.subr.mxu0 0.0
    %527 = vmatpush1.msra.mxu0 0.0
    %528 = vmatprep.subr.mxu0 0.0
    %529 = vmatpush1.msra.mxu0 0.0
    %530 = vmatprep.subr.mxu0 0.0
    %531 = vmatpush1.msra.mxu0 0.0
    %532 = vmatprep.subr.mxu0 0.0
    %533 = vmatpush1.msra.mxu0 0.0
    %534 = vmatprep.subr.mxu0 0.0
    %535 = vmatpush1.msra.mxu0 0.0
    %536 = vmatprep.subr.mxu0 0.0
    %537 = vmatpush1.msra.mxu0 0.0
    %538 = vmatprep.subr.mxu0 0.0
    %539 = vmatpush1.msra.mxu0 0.0
    %540 = vmatprep.subr.mxu0 0.0
    %541 = vmatpush1.msra.mxu0 0.0
    %542 = vmatprep.subr.mxu0 0.0
    %543 = vmatpush1.msra.mxu0 0.0
    %544 = vmatprep.subr.mxu0 0.0
    %545 = vmatpush1.msra.mxu0 0.0
    %546 = vmatprep.subr.mxu0 0.0
    %547 = vmatpush1.msra.mxu0 0.0
    %548 = vmatprep.subr.mxu0 0.0
    %549 = vmatpush1.msra.mxu0 0.0
    %550 = vmatprep.subr.mxu0 0.0
    %551 = vmatpush1.msra.mxu0 0.0
    %552 = vmatprep.subr.mxu0 0.0
    %553 = vmatpush1.msra.mxu0 0.0
    %554 = vmatprep.subr.mxu0 0.0
    %555 = vmatpush1.msra.mxu0 0.0
    %556 = vmatprep.subr.mxu0 0.0
    %557 = vmatpush1.msra.mxu0 0.0
    %558 = vmatprep.subr.mxu0 0.0
    %559 = vmatpush1.msra.mxu0 0.0
    %560 = vmatprep.subr.mxu0 0.0
    %561 = vmatpush1.msra.mxu0 0.0
    %562 = vmatprep.subr.mxu0 0.0
    %563 = vmatpush1.msra.mxu0 0.0
    %564 = vmatprep.subr.mxu0 0.0
    %565 = vmatpush1.msra.mxu0 0.0
    %566 = vmatprep.subr.mxu0 0.0
    %567 = vmatpush1.msra.mxu0 0.0
    %568 = vmatprep.subr.mxu0 0.0
    %569 = vmatpush1.msra.mxu0 0.0
    %570 = vmatprep.subr.mxu0 0.0
    %571 = vmatpush1.msra.mxu0 0.0
    %572 = vmatprep.subr.mxu0 0.0
    %573 = vmatpush1.msra.mxu0 0.0
    %574 = vmatprep.subr.mxu0 0.0
    %575 = vmatpush1.msra.mxu0 0.0
    %576 = vmatprep.subr.mxu0 0.0
    %577 = vmatpush1.msra.mxu0 0.0
    %578 = vmatprep.subr.mxu0 0.0
    %579 = vmatpush1.msra.mxu0 0.0
    %580 = vmatprep.subr.mxu0 0.0
    %581 = vmatpush1.msra.mxu0 0.0
    %582 = vmatprep.subr.mxu0 0.0
    %583 = vmatpush1.msra.mxu0 0.0
    %584 = vmatprep.mubr.f32.mxu0 0.0
    %585 = vmatmul.mubr.f32.gmra.mrb[0].mxu0 %v518
    %v586 = vpop.f32.mrb[0].mxu0
    %v587 = vadd.f32 0.0, %v586
    %v588 = vpop.f32.mrb[0].mxu0
    %589 = vdwg.mxu0
    %v590 = vmul.f32 %v587, %v190
    %v591 = vpack.c.bf16 %v590, %v590
    %v592 = vld [vmem:[%s10] sm:$0xf]
    %v593 = vld [vmem:[%s10 + $0x4] sm:$0xf]
    %v594 = vld [vmem:[%s10 + $0x8] sm:$0xf]
    %v595 = vld [vmem:[%s10 + $0xc] sm:$0xf]
    %v596 = vld [vmem:[%s10 + $0x10] sm:$0xf]
    %v597 = vld [vmem:[%s10 + $0x14] sm:$0xf]
    %v598 = vld [vmem:[%s10 + $0x18] sm:$0xf]
    %v599 = vld [vmem:[%s10 + $0x1c] sm:$0xf]
    %v600 = vld [vmem:[%s10 + $0x20] sm:$0xf]
    %v601 = vld [vmem:[%s10 + $0x24] sm:$0xf]
    %v602 = vld [vmem:[%s10 + $0x28] sm:$0xf]
    %v603 = vld [vmem:[%s10 + $0x2c] sm:$0xf]
    %v604 = vld [vmem:[%s10 + $0x30] sm:$0xf]
    %v605 = vld [vmem:[%s10 + $0x34] sm:$0xf]
    %v606 = vld [vmem:[%s10 + $0x38] sm:$0xf]
    %v607 = vld [vmem:[%s10 + $0x3c] sm:$0xf]
    %v608 = vld [vmem:[%s11] sm:$0x1]
    %v610 = vlaneseq
    %v611 = vshrl.u32 %v610, 7
    %v612 = vsub.s32 0, %v611
    %v613 = vrot.slane %v608, %v612
    %v631 = vunpack.c.l.b16 %v592
    %v632 = vunpack.c.l.b16 %v593
    %v633 = vunpack.c.l.b16 %v594
    %v634 = vunpack.c.l.b16 %v595
    %v635 = vunpack.c.l.b16 %v596
    %v636 = vunpack.c.l.b16 %v597
    %v637 = vunpack.c.l.b16 %v598
    %v638 = vunpack.c.l.b16 %v599
    %v639 = vunpack.c.l.b16 %v600
    %v640 = vunpack.c.l.b16 %v601
    %v641 = vunpack.c.l.b16 %v602
    %v642 = vunpack.c.l.b16 %v603
    %v643 = vunpack.c.l.b16 %v604
    %v644 = vunpack.c.l.b16 %v605
    %v645 = vunpack.c.l.b16 %v606
    %v646 = vunpack.c.l.b16 %v607
    %v647 = vpack.c.b16 %v632, %v631
    %v648 = vpack.c.b16 %v634, %v633
    %v649 = vpack.c.b16 %v636, %v635
    %v650 = vpack.c.b16 %v638, %v637
    %v651 = vpack.c.b16 %v640, %v639
    %v652 = vpack.c.b16 %v642, %v641
    %v653 = vpack.c.b16 %v644, %v643
    %v654 = vpack.c.b16 %v646, %v645
    %663 = vmatprep.subr.bf16.mxu0 0
    %664 = vmatpush1.bf16.msra.mxu0 %v647
    %665 = vmatprep.subr.bf16.mxu0 0
    %666 = vmatpush1.bf16.msra.mxu0 %v648
    %667 = vmatprep.subr.bf16.mxu0 0
    %668 = vmatpush1.bf16.msra.mxu0 %v649
    %669 = vmatprep.subr.bf16.mxu0 0
    %670 = vmatpush1.bf16.msra.mxu0 %v650
    %671 = vmatprep.subr.bf16.mxu0 0
    %672 = vmatpush1.bf16.msra.mxu0 %v651
    %673 = vmatprep.subr.bf16.mxu0 0
    %674 = vmatpush1.bf16.msra.mxu0 %v652
    %675 = vmatprep.subr.bf16.mxu0 0
    %676 = vmatpush1.bf16.msra.mxu0 %v653
    %677 = vmatprep.subr.bf16.mxu0 0
    %678 = vmatpush1.bf16.msra.mxu0 %v654
    %679 = vmatprep.subr.bf16.mxu0 0
    %680 = vmatpush1.bf16.msra.mxu0 0
    %681 = vmatprep.subr.bf16.mxu0 0
    %682 = vmatpush1.bf16.msra.mxu0 0
    %683 = vmatprep.subr.bf16.mxu0 0
    %684 = vmatpush1.bf16.msra.mxu0 0
    %685 = vmatprep.subr.bf16.mxu0 0
    %686 = vmatpush1.bf16.msra.mxu0 0
    %687 = vmatprep.subr.bf16.mxu0 0
    %688 = vmatpush1.bf16.msra.mxu0 0
    %689 = vmatprep.subr.bf16.mxu0 0
    %690 = vmatpush1.bf16.msra.mxu0 0
    %691 = vmatprep.subr.bf16.mxu0 0
    %692 = vmatpush1.bf16.msra.mxu0 0
    %693 = vmatprep.subr.bf16.mxu0 0
    %694 = vmatpush1.bf16.msra.mxu0 0
    %695 = vmatprep.mubr.bf16.mxu0 0
    %696 = vmatmul.mubr.bf16.gmra.mrb[0].mxu0 %v591
    %v697 = vpop.f32.mrb[0].mxu0
    %v698 = vadd.f32 %v613, %v697
    %v699 = vpop.f32.mrb[0].mxu0
    %v700 = vpop.f32.mrb[0].mxu0
    %v701 = vpop.f32.mrb[0].mxu0
    %702 = vdwg.mxu0
    %703 = vst.msk [vmem:[#allocation2] sm:$0xff] %vm70, %v698
    // Predicated region
    $region50: #{tpu_custom_call.1} parent=1 // pred_check
      _
    $region51: #{tpu_custom_call.1} parent=1 // pred_check_branch
      %705 = sbr.rel (0) target = $region53
    $region52: #{tpu_custom_call.1} parent=1 // pred_region
      %s707 = ssub.s32 128, 128
      %708 = vsyncadd [#allocation3], %s707
      %s710 = sshll.u32 [#allocation2], 4
      %s711 = int_to_ptr.vmem [resolvable:$true] %s710
      %713 = dma.vmem_to_hbm [thread:$0]  %s711, 128, %s12, [#allocation3]
    $region53: #{tpu_custom_call.1} parent=1 // pred_fallthru
      _
    // Predicated region
    $region54: #{tpu_custom_call.1} parent=1 // pred_check
      _
    $region55: #{tpu_custom_call.1} parent=1 // pred_check_branch
      %715 = sbr.rel (0) target = $region57
    $region56: #{tpu_custom_call.1} parent=1 // pred_region
      %716 = dma.done [#allocation3], 128
    $region57: #{tpu_custom_call.1} parent=1 // pred_fallthru
      _
    %717 = vsyncpa [#allocation3], 1

</llo_original>
